<compile_context>
chip_gen: v6e
topology: v6e:2x2x1
jax: 0.10.0
libtpu: 0.0.40
codegen_flags: <defaults>
</compile_context>

<pallas_src>
import jax
import jax.numpy as jnp
from jax.experimental import pallas as pl
from jax.experimental.pallas import tpu as pltpu


def _round_up(x, m):
    return (x + m - 1) // m * m


def _lora_kernel(alpha_ref, x_ref, a_ref, b_ref, o_ref, xa_ref):
    # Grid axes: i = batch tile (parallel), j = out_dim tile (arbitrary).
    @pl.when(pl.program_id(1) == 0)
    def _():
        xa = jnp.dot(x_ref[...], a_ref[...], preferred_element_type=jnp.float32)
        # Scale the small (tb, rank) intermediate instead of the (tb, out) output.
        xa_ref[...] = (alpha_ref[0, 0] * xa).astype(xa_ref.dtype)

    y = jnp.dot(xa_ref[...], b_ref[...], preferred_element_type=jnp.float32)
    o_ref[...] = y.astype(o_ref.dtype)


def lora_forward(x, A, B, alpha, *, tb=None, tn=None):
    """alpha * (x @ A @ B) via a Pallas TPU kernel (LoRALayer.forward)."""
    batch, in_dim = x.shape
    rank, out_dim = B.shape
    assert A.shape == (in_dim, rank)

    dtype = x.dtype
    itemsize = jnp.dtype(dtype).itemsize
    sublane = 16 if dtype == jnp.bfloat16 else 8

    # ---- tile selection -------------------------------------------------
    # out_dim tile: lane-dense multiple of 128 -> unmasked output stores.
    if tn is None:
        tn = min(512, _round_up(out_dim, 128))
    assert tn % 128 == 0
    out_pad = _round_up(out_dim, tn)

    # batch tile: multiple of the sublane count; large enough to amortize the
    # per-grid-step overhead, small enough to keep 2-deep buffering on v7x.
    if tb is None:
        tb = min(256, _round_up(batch, sublane))
    tb = _round_up(tb, sublane)
    batch_pad = _round_up(batch, tb)

    # ---- pad inputs to tile boundaries (sliced off at the end) -----------
    if batch_pad != batch:
        x = jnp.pad(x, ((0, batch_pad - batch), (0, 0)))
    if out_pad != out_dim:
        B = jnp.pad(B, ((0, 0), (0, out_pad - out_dim)))

    grid = (batch_pad // tb, out_pad // tn)

    # bf16 inputs keep the intermediate bf16 (native MXU on v6e/v7x).
    xa_dtype = jnp.bfloat16 if dtype == jnp.bfloat16 else jnp.float32

    alpha_arr = jnp.full((1, 1), alpha, dtype=jnp.float32)

    # Rough per-step VMEM footprint (double-buffered x/out/B tiles + A + xa).
    est = (2 * tb * in_dim * itemsize + 2 * tb * tn * itemsize
           + 2 * in_dim * rank * itemsize + 2 * rank * tn * itemsize
           + tb * max(rank, 128) * 4)
    # Raise scoped VMEM limit, but stay <= 64 MiB so it is valid on v7x too.
    vmem_limit = int(min(max(2 * est, 32 * 1024 * 1024), 64 * 1024 * 1024))

    cost = pl.CostEstimate(
        flops=2 * batch * rank * (in_dim + out_dim),
        transcendentals=0,
        bytes_accessed=(batch * in_dim + batch * out_dim
                        + in_dim * rank + rank * out_dim) * itemsize,
    )

    out = pl.pallas_call(
        _lora_kernel,
        out_shape=jax.ShapeDtypeStruct((batch_pad, out_pad), dtype),
        grid_spec=pltpu.PrefetchScalarGridSpec(
            num_scalar_prefetch=0,
            grid=grid,
            in_specs=[
                pl.BlockSpec(memory_space=pltpu.MemorySpace.SMEM),   # alpha scalar
                pl.BlockSpec((tb, in_dim), lambda i, j: (i, 0)),     # x tile (not re-DMA'd over j)
                pl.BlockSpec((in_dim, rank), lambda i, j: (0, 0)),   # A (whole, resident)
                pl.BlockSpec((rank, tn), lambda i, j: (0, j)),       # B out_dim tile
            ],
            out_specs=pl.BlockSpec((tb, tn), lambda i, j: (i, j)),
            scratch_shapes=[pltpu.VMEM((tb, rank), xa_dtype)],       # xa = alpha * x @ A
        ),
        compiler_params=pltpu.CompilerParams(
            dimension_semantics=("parallel", "arbitrary"),
            vmem_limit_bytes=vmem_limit,
        ),
        cost_estimate=cost,
    )(alpha_arr, x, A, B)

    return out[:batch, :out_dim]


if __name__ == "__main__":
    key = jax.random.PRNGKey(0)
    k1, k2, k3, k4, k5 = jax.random.split(key, 5)

    # --- Test 1: exact LoRALayer.__init__ setup (A = randn/sqrt(rank), B = 0) ---
    in_dim, out_dim, rank, alpha = 32, 32, 8, 2.0
    batch = 8
    std_dev = 1.0 / jnp.sqrt(jnp.float32(rank))
    A1 = jax.random.normal(k1, (in_dim, rank), dtype=jnp.float32) * std_dev
    B1 = jnp.zeros((rank, out_dim), dtype=jnp.float32)
    x1 = jax.random.normal(k2, (batch, in_dim), dtype=jnp.float32)

    out1 = jax.block_until_ready(lora_forward(x1, A1, B1, alpha))
    ref1 = alpha * (x1 @ A1 @ B1)
    assert out1.shape == (batch, out_dim)
    assert jnp.allclose(out1, ref1, atol=1e-4, rtol=1e-4)

    # --- Test 2: non-zero B, ragged batch, non-multiple-of-128 out_dim,
    #             multi-step grid in both axes (padding + scratch-reuse path) ---
    b2, d_in2, r2, d_out2, alpha2 = 40, 48, 4, 200, 0.5
    A2 = jax.random.normal(k3, (d_in2, r2), dtype=jnp.float32) / jnp.sqrt(jnp.float32(r2))
    B2 = jax.random.normal(k4, (r2, d_out2), dtype=jnp.float32)
    x2 = jax.random.normal(k5, (b2, d_in2), dtype=jnp.float32)

    got2 = jax.block_until_ready(lora_forward(x2, A2, B2, alpha2, tb=16, tn=128))
    ref2 = alpha2 * (x2 @ A2 @ B2)
    assert got2.shape == (b2, d_out2)
    assert jnp.allclose(got2, ref2, atol=1e-4, rtol=1e-4)

    print("KERNEL_OK")
</pallas_src>

<mosaic_0001>
module attributes {stable_mosaic.version = 11 : i64} {
  func.func @_lora_kernel(%arg0: i32, %arg1: i32, %arg2: memref<1x1xf32, #tpu.memory_space<smem>>, %arg3: memref<8x32xf32, #tpu.memory_space<vmem>>, %arg4: memref<32x8xf32, #tpu.memory_space<vmem>>, %arg5: memref<8x128xf32, #tpu.memory_space<vmem>>, %arg6: memref<8x128xf32, #tpu.memory_space<vmem>>, %arg7: memref<8x8xf32, #tpu.memory_space<vmem>>) attributes {dimension_semantics = [#tpu.dimension_semantics<parallel>, #tpu.dimension_semantics<arbitrary>], iteration_bounds = array<i64: 1, 1>, scalar_prefetch = 0 : i64, scratch_operands = 1 : i64, tpu.core_type = #tpu.core_type<tc>, window_params = [{transform_indices = @transform_0, window_bounds = array<i64: 1, 1>}, {transform_indices = @transform_1, window_bounds = array<i64: 8, 32>}, {pipeline_mode = #tpu.pipeline_mode<synchronous>, transform_indices = @transform_2, window_bounds = array<i64: 32, 8>}, {transform_indices = @transform_3, window_bounds = array<i64: 8, 128>}, {transform_indices = @transform_4, window_bounds = array<i64: 8, 128>}]} {
    %c0_i32 = arith.constant 0 : i32
    %0 = arith.cmpi eq, %arg1, %c0_i32 : i32
    %1 = arith.extui %0 : i1 to i32
    %c0_i32_0 = arith.constant 0 : i32
    %2 = arith.cmpi ne, %1, %c0_i32_0 : i32
    scf.if %2 {
      %c0_6 = arith.constant 0 : index
      %c0_7 = arith.constant 0 : index
      %7 = vector.load %arg3[%c0_6, %c0_7] : memref<8x32xf32, #tpu.memory_space<vmem>>, vector<8x32xf32>
      %c0_8 = arith.constant 0 : index
      %c0_9 = arith.constant 0 : index
      %8 = vector.load %arg4[%c0_8, %c0_9] : memref<32x8xf32, #tpu.memory_space<vmem>>, vector<32x8xf32>
      %cst_10 = arith.constant dense<0.000000e+00> : vector<8x8xf32>
      %9 = tpu.matmul %7, %8, %cst_10 {dimension_numbers = #tpu.dot_dimension_numbers<[1], [0], [0], [1], [0, 0, 1, 1], [], []>} : vector<8x32xf32>, vector<32x8xf32>, vector<8x8xf32> -> vector<8x8xf32>
      %c0_11 = arith.constant 0 : index
      %c0_12 = arith.constant 0 : index
      %10 = memref.load %arg2[%c0_11, %c0_12] : memref<1x1xf32, #tpu.memory_space<smem>>
      %11 = vector.broadcast %10 : f32 to vector<8x8xf32>
      %12 = arith.mulf %11, %9 : vector<8x8xf32>
      %c0_13 = arith.constant 0 : index
      %c0_14 = arith.constant 0 : index
      %13 = vector.load %arg7[%c0_13, %c0_14] : memref<8x8xf32, #tpu.memory_space<vmem>>, vector<8x8xf32>
      tpu.vector_store %arg7[%c0_13, %c0_14], %12 {strides = array<i32>} : memref<8x8xf32, #tpu.memory_space<vmem>>, vector<8x8xf32>,
    } else {
    }
    %c0 = arith.constant 0 : index
    %c0_1 = arith.constant 0 : index
    %3 = vector.load %arg7[%c0, %c0_1] : memref<8x8xf32, #tpu.memory_space<vmem>>, vector<8x8xf32>
    %c0_2 = arith.constant 0 : index
    %c0_3 = arith.constant 0 : index
    %4 = vector.load %arg5[%c0_2, %c0_3] : memref<8x128xf32, #tpu.memory_space<vmem>>, vector<8x128xf32>
    %cst = arith.constant dense<0.000000e+00> : vector<8x128xf32>
    %5 = tpu.matmul %3, %4, %cst {dimension_numbers = #tpu.dot_dimension_numbers<[1], [0], [0], [1], [0, 0, 1, 1], [], []>} : vector<8x8xf32>, vector<8x128xf32>, vector<8x128xf32> -> vector<8x128xf32>
    %c0_4 = arith.constant 0 : index
    %c0_5 = arith.constant 0 : index
    %6 = vector.load %arg6[%c0_4, %c0_5] : memref<8x128xf32, #tpu.memory_space<vmem>>, vector<8x128xf32>
    tpu.vector_store %arg6[%c0_4, %c0_5], %5 {strides = array<i32>} : memref<8x128xf32, #tpu.memory_space<vmem>>, vector<8x128xf32>,
    return
  }
  func.func @transform_0(%arg0: i32, %arg1: i32) -> (i32, i32) {
    %c0_i32 = arith.constant 0 : i32
    %c0_i32_0 = arith.constant 0 : i32
    %c0_i32_1 = arith.constant 0 : i32
    return %c0_i32, %c0_i32_0 : i32, i32
  }
  func.func @transform_1(%arg0: i32, %arg1: i32) -> (i32, i32) {
    %c0_i32 = arith.constant 0 : i32
    %c0_i32_0 = arith.constant 0 : i32
    return %arg0, %c0_i32 : i32, i32
  }
  func.func @transform_2(%arg0: i32, %arg1: i32) -> (i32, i32) {
    %c0_i32 = arith.constant 0 : i32
    %c0_i32_0 = arith.constant 0 : i32
    %c0_i32_1 = arith.constant 0 : i32
    return %c0_i32, %c0_i32_0 : i32, i32
  }
  func.func @transform_3(%arg0: i32, %arg1: i32) -> (i32, i32) {
    %c0_i32 = arith.constant 0 : i32
    %c0_i32_0 = arith.constant 0 : i32
    return %c0_i32, %arg1 : i32, i32
  }
  func.func @transform_4(%arg0: i32, %arg1: i32) -> (i32, i32) {
    %c0_i32 = arith.constant 0 : i32
    return %arg0, %arg1 : i32, i32
  }
}

</mosaic_0001>

<llo_original>
// kernel: tpu_custom_call.1
$region0: #{tpu_custom_call.1}
  #allocation0 [shape = 'u32[]', space=smem, size = 0x4, offset = 0x4, fixed_abs, tag = 'smem constant byte address 0x4 - core index']
  #allocation1 [shape = 'u32[144,128]{1,0:T(1,128)}', space=vmem, size = 0x12000, scoped, tag = 'internal scratch']
  #allocation2 [shape = 'f32[8,8]{1,0:T(8,128)}', space=vmem, size = 0x1000, scoped, tag = 'scratch operand']
  #allocation3 [shape = 'f32[1,1]{1,0:T(1,128)S(6)}', space=smem, size = 0x200, scoped, tag = 'scoped memory for tpu_custom_call.1']
  %s0 = inlined_call_operand.<no memory space> [shape: f32[1,1], index: 0, kind: input, shape index: {}]
  %s1 = inlined_call_operand.vmem [shape: f32[8,32], index: 1, kind: input, shape index: {}]
  %s2 = inlined_call_operand.vmem [shape: f32[32,8], index: 2, kind: input, shape index: {}]
  %s3 = inlined_call_operand.vmem [shape: f32[8,128], index: 3, kind: input, shape index: {}]
  %s4 = inlined_call_operand.hbm [shape: f32[8,128], index: 4, kind: output, shape index: {}]
  %s5 = sld [smem:[#allocation0]]
  $region30: #{tpu_custom_call.1} parent=0
    _
  %s7 = ssub.s32 1, %s5
  %s8 = scalar_select 0, %s7, %s5
  %9 = sst [smem:[#allocation3]] %s0
  $region1: #{tpu_custom_call.1} parent=0
    #allocation4 [shape = 'u8[4096]{0}', space=vmem, size = 0x1000, scoped, tag = 'output window, operand 0, single buffered']
    #allocation5 [shape = 's32[1]{0}', space=sflag, size = 0x4, scoped, tag = 'scoped memory for tpu_custom_call.1']
    %10 = vsyncpa [#allocation5], 0
    // Predicated region
    $region2: #{tpu_custom_call.1} parent=1 // pred_check
      _
    $region3: #{tpu_custom_call.1} parent=1 // pred_check_branch
      %12 = sbr.rel (0) target = $region5
    $region4: #{tpu_custom_call.1} parent=1 // pred_region
      _
    $region5: #{tpu_custom_call.1} parent=1 // pred_fallthru
      _
    // Predicated region
    $region6: #{tpu_custom_call.1} parent=1 // pred_check
      _
    $region7: #{tpu_custom_call.1} parent=1 // pred_check_branch
      %14 = sbr.rel (0) target = $region9
    $region8: #{tpu_custom_call.1} parent=1 // pred_region
      _
    $region9: #{tpu_custom_call.1} parent=1 // pred_fallthru
      _
    // Predicated region
    $region10: #{tpu_custom_call.1} parent=1 // pred_check
      _
    $region11: #{tpu_custom_call.1} parent=1 // pred_check_branch
      %16 = sbr.rel (0) target = $region13
    $region12: #{tpu_custom_call.1} parent=1 // pred_region
      _
    $region13: #{tpu_custom_call.1} parent=1 // pred_fallthru
      _
    // Predicated region
    $region14: #{tpu_custom_call.1} parent=1 // pred_check
      _
    $region15: #{tpu_custom_call.1} parent=1 // pred_check_branch
      %18 = sbr.rel (0) target = $region17
    $region16: #{tpu_custom_call.1} parent=1 // pred_region
      _
    $region17: #{tpu_custom_call.1} parent=1 // pred_fallthru
      _
    %p19 = scmp.eq.s32.totalorder 0, 0
    // Predicated region
    $region18: #{tpu_custom_call.1} parent=1 // pred_check
      %p20 = pneg %p19
    $region19: #{tpu_custom_call.1} parent=1 // pred_check_branch
      %22 = sbr.rel (%p20) target = $region21
    $region20: #{tpu_custom_call.1} parent=1 // pred_region
      %v23 = vld [vmem:[%s1] sm:$0xff]
      %v24 = vld [vmem:[%s2] sm:$0xff]
      %v25 = vld [vmem:[%s2 + $0x8] sm:$0xff]
      %v26 = vld [vmem:[%s2 + $0x10] sm:$0xff]
      %v27 = vld [vmem:[%s2 + $0x18] sm:$0xff]
      %vm28 = vcmask 261120
      %v30 = vsel %vm28, %v23, 0
      %32 = vmatprep.subr.mxu0 0.0
      %33 = vmatpush1.msra.mxu0 0.0
      %34 = vmatprep.subr.mxu0 0.0
      %35 = vmatpush1.msra.mxu0 0.0
      %36 = vmatprep.subr.mxu0 0.0
      %37 = vmatpush1.msra.mxu0 0.0
      %38 = vmatprep.subr.mxu0 0.0
      %39 = vmatpush1.msra.mxu0 0.0
      %40 = vmatprep.subr.mxu0 0.0
      %41 = vmatpush1.msra.mxu0 0.0
      %42 = vmatprep.subr.mxu0 0.0
      %43 = vmatpush1.msra.mxu0 0.0
      %44 = vmatprep.subr.mxu0 0.0
      %45 = vmatpush1.msra.mxu0 0.0
      %46 = vmatprep.subr.mxu0 0.0
      %47 = vmatpush1.msra.mxu0 0.0
      %48 = vmatprep.subr.mxu0 0.0
      %49 = vmatpush1.msra.mxu0 0.0
      %50 = vmatprep.subr.mxu0 0.0
      %51 = vmatpush1.msra.mxu0 0.0
      %52 = vmatprep.subr.mxu0 0.0
      %53 = vmatpush1.msra.mxu0 0.0
      %54 = vmatprep.subr.mxu0 0.0
      %55 = vmatpush1.msra.mxu0 0.0
      %56 = vmatprep.subr.mxu0 0.0
      %57 = vmatpush1.msra.mxu0 %v27
      %58 = vmatprep.subr.mxu0 0.0
      %59 = vmatpush1.msra.mxu0 %v26
      %60 = vmatprep.subr.mxu0 0.0
      %61 = vmatpush1.msra.mxu0 %v25
      %62 = vmatprep.subr.mxu0 0.0
      %63 = vmatpush1.msra.mxu0 %v24
      %64 = vmatprep.subr.mxu0 0.0
      %65 = vmatpush2.msra.mxu0 0.0
      %66 = vmatprep.subr.mxu0 0.0
      %67 = vmatpush2.msra.mxu0 0.0
      %68 = vmatprep.subr.mxu0 0.0
      %69 = vmatpush2.msra.mxu0 0.0
      %70 = vmatprep.subr.mxu0 0.0
      %71 = vmatpush2.msra.mxu0 0.0
      %72 = vmatprep.subr.mxu0 0.0
      %73 = vmatpush2.msra.mxu0 0.0
      %74 = vmatprep.subr.mxu0 0.0
      %75 = vmatpush2.msra.mxu0 0.0
      %76 = vmatprep.subr.mxu0 0.0
      %77 = vmatpush2.msra.mxu0 0.0
      %78 = vmatprep.subr.mxu0 0.0
      %79 = vmatpush2.msra.mxu0 0.0
      %80 = vmatprep.subr.mxu0 0.0
      %81 = vmatpush2.msra.mxu0 0.0
      %82 = vmatprep.subr.mxu0 0.0
      %83 = vmatpush2.msra.mxu0 0.0
      %84 = vmatprep.subr.mxu0 0.0
      %85 = vmatpush2.msra.mxu0 0.0
      %86 = vmatprep.subr.mxu0 0.0
      %87 = vmatpush2.msra.mxu0 0.0
      %88 = vmatprep.subr.mxu0 0.0
      %89 = vmatpush2.msra.mxu0 0.0
      %90 = vmatprep.subr.mxu0 0.0
      %91 = vmatpush2.msra.mxu0 0.0
      %92 = vmatprep.subr.mxu0 0.0
      %93 = vmatpush2.msra.mxu0 0.0
      %94 = vmatprep.subr.mxu0 0.0
      %95 = vmatpush2.msra.mxu0 0.0
      %96 = vmatprep.mubr.f32.mxu0 0.0
      %97 = vmatmul.mubr.f32.gmra.mxu0 %v30
      %v98 = vpop.f32.mrf.mxu0
      %v99 = vadd.f32 0.0, %v98
      %v100 = vpop.f32.mrf.mxu0
      %101 = vdwg.mxu0
      %s102 = sld [smem:[#allocation3]]
      %v103 = vstv %s102
      %v104 = vmul.f32 %v103, %v99
      %vm105 = vcmask 64512
      %106 = vst.msk [vmem:[#allocation2] sm:$0xff] %vm105, %v104
    $region21: #{tpu_custom_call.1} parent=1 // pred_fallthru
      _
    %v107 = vld [vmem:[#allocation2] sm:$0xff]
    %v108 = vld [vmem:[%s3] sm:$0xff]
    %vm109 = vcmask 64512
    %v111 = vsel %vm109, %v107, 0
    %113 = vmatprep.subr.mxu0 0.0
    %114 = vmatpush1.msra.mxu0 0.0
    %115 = vmatprep.subr.mxu0 0.0
    %116 = vmatpush1.msra.mxu0 0.0
    %117 = vmatprep.subr.mxu0 0.0
    %118 = vmatpush1.msra.mxu0 0.0
    %119 = vmatprep.subr.mxu0 0.0
    %120 = vmatpush1.msra.mxu0 0.0
    %121 = vmatprep.subr.mxu0 0.0
    %122 = vmatpush1.msra.mxu0 0.0
    %123 = vmatprep.subr.mxu0 0.0
    %124 = vmatpush1.msra.mxu0 0.0
    %125 = vmatprep.subr.mxu0 0.0
    %126 = vmatpush1.msra.mxu0 0.0
    %127 = vmatprep.subr.mxu0 0.0
    %128 = vmatpush1.msra.mxu0 0.0
    %129 = vmatprep.subr.mxu0 0.0
    %130 = vmatpush1.msra.mxu0 0.0
    %131 = vmatprep.subr.mxu0 0.0
    %132 = vmatpush1.msra.mxu0 0.0
    %133 = vmatprep.subr.mxu0 0.0
    %134 = vmatpush1.msra.mxu0 0.0
    %135 = vmatprep.subr.mxu0 0.0
    %136 = vmatpush1.msra.mxu0 0.0
    %137 = vmatprep.subr.mxu0 0.0
    %138 = vmatpush1.msra.mxu0 0.0
    %139 = vmatprep.subr.mxu0 0.0
    %140 = vmatpush1.msra.mxu0 0.0
    %141 = vmatprep.subr.mxu0 0.0
    %142 = vmatpush1.msra.mxu0 0.0
    %143 = vmatprep.subr.mxu0 0.0
    %144 = vmatpush1.msra.mxu0 %v108
    %145 = vmatprep.subr.mxu0 0.0
    %146 = vmatpush2.msra.mxu0 0.0
    %147 = vmatprep.subr.mxu0 0.0
    %148 = vmatpush2.msra.mxu0 0.0
    %149 = vmatprep.subr.mxu0 0.0
    %150 = vmatpush2.msra.mxu0 0.0
    %151 = vmatprep.subr.mxu0 0.0
    %152 = vmatpush2.msra.mxu0 0.0
    %153 = vmatprep.subr.mxu0 0.0
    %154 = vmatpush2.msra.mxu0 0.0
    %155 = vmatprep.subr.mxu0 0.0
    %156 = vmatpush2.msra.mxu0 0.0
    %157 = vmatprep.subr.mxu0 0.0
    %158 = vmatpush2.msra.mxu0 0.0
    %159 = vmatprep.subr.mxu0 0.0
    %160 = vmatpush2.msra.mxu0 0.0
    %161 = vmatprep.subr.mxu0 0.0
    %162 = vmatpush2.msra.mxu0 0.0
    %163 = vmatprep.subr.mxu0 0.0
    %164 = vmatpush2.msra.mxu0 0.0
    %165 = vmatprep.subr.mxu0 0.0
    %166 = vmatpush2.msra.mxu0 0.0
    %167 = vmatprep.subr.mxu0 0.0
    %168 = vmatpush2.msra.mxu0 0.0
    %169 = vmatprep.subr.mxu0 0.0
    %170 = vmatpush2.msra.mxu0 0.0
    %171 = vmatprep.subr.mxu0 0.0
    %172 = vmatpush2.msra.mxu0 0.0
    %173 = vmatprep.subr.mxu0 0.0
    %174 = vmatpush2.msra.mxu0 0.0
    %175 = vmatprep.subr.mxu0 0.0
    %176 = vmatpush2.msra.mxu0 0.0
    %177 = vmatprep.mubr.f32.mxu0 0.0
    %178 = vmatmul.mubr.f32.gmra.mxu0 %v111
    %v179 = vpop.f32.mrf.mxu0
    %v180 = vadd.f32 0.0, %v179
    %v181 = vpop.f32.mrf.mxu0
    %182 = vdwg.mxu0
    %183 = vst [vmem:[#allocation4] sm:$0xff] %v180
    // Predicated region
    $region22: #{tpu_custom_call.1} parent=1 // pred_check
      _
    $region23: #{tpu_custom_call.1} parent=1 // pred_check_branch
      %185 = sbr.rel (0) target = $region25
    $region24: #{tpu_custom_call.1} parent=1 // pred_region
      %s187 = ssub.s32 128, 128
      %188 = vsyncadd [#allocation5], %s187
      %s190 = sshll.u32 [#allocation4], 4
      %s191 = int_to_ptr.vmem [resolvable:$true] %s190
      %193 = dma.vmem_to_hbm [thread:$0]  %s191, 128, %s4, [#allocation5]
    $region25: #{tpu_custom_call.1} parent=1 // pred_fallthru
      _
    // Predicated region
    $region26: #{tpu_custom_call.1} parent=1 // pred_check
      _
    $region27: #{tpu_custom_call.1} parent=1 // pred_check_branch
      %195 = sbr.rel (0) target = $region29
    $region28: #{tpu_custom_call.1} parent=1 // pred_region
      %196 = dma.done [#allocation5], 128
    $region29: #{tpu_custom_call.1} parent=1 // pred_fallthru
      _
    %197 = vsyncpa [#allocation5], 1

</llo_original>
